<compile_context>
chip_gen: v7x
topology: tpu7x:2x2x1
jax: 0.10.0
libtpu: 0.0.40
codegen_flags: <defaults>
</compile_context>

<pallas_src>
import jax
import jax.numpy as jnp
from jax.experimental import pallas as pl
from jax.experimental.pallas import tpu as pltpu

HIDDEN = 768
NUM_CLASSES = 4
HEADS_PAD = 128          # 3 + NUM_CLASSES zero-padded to one lane-dense output
USE_CE = True            # corresponds to use_ce == 'True'


def _vmem_limit_bytes():
    """~half of physical VMEM: 64 MiB on v5e/v6e (128 MiB), 32 MiB on v7x (64 MiB/TC)."""
    try:
        cap = int(pltpu.get_tpu_info().vmem_capacity_bytes)
    except Exception:
        cap = 128 * 1024 * 1024
    return max(16 * 1024 * 1024, min(cap // 2, 64 * 1024 * 1024))


# ---------------------------------------------------------------------------
# Kernel 1: streaming frame-wise projection  feats[tile] = x[tile] @ W + b
#           (bf16 inputs, f32 MXU accumulate, bf16 output)
# ---------------------------------------------------------------------------
def _feats_kernel(x_ref, w_ref, b_ref, feats_ref):
    acc = jnp.dot(x_ref[...], w_ref[...], preferred_element_type=jnp.float32)
    feats_ref[...] = (acc + b_ref[...]).astype(feats_ref.dtype)


# ---------------------------------------------------------------------------
# Kernel 2 (tiny): pooled = mean_t(x) @ W_emo + b_emo ;
#                  heads  = pooled @ W_heads + b_heads
#           fc_valence and fc_pred fused into one 128-wide lane-dense matmul.
# ---------------------------------------------------------------------------
def _heads_kernel(xmean_ref, w_emo_ref, b_emo_ref, w_heads_ref, b_heads_ref,
                  pooled_ref, heads_ref):
    pooled = (
        jnp.dot(xmean_ref[...], w_emo_ref[...],
                preferred_element_type=jnp.float32)
        + b_emo_ref[...]
    )
    pooled_ref[...] = pooled.astype(pooled_ref.dtype)
    heads_ref[...] = (
        jnp.dot(pooled, w_heads_ref[...], preferred_element_type=jnp.float32)
        + b_heads_ref[...]
    ).astype(heads_ref.dtype)


def speech_classifier(speech, params, *, tm=1024,
                      compute_dtype=jnp.bfloat16,
                      feats_dtype=jnp.bfloat16):
    """speech: (B, T, D_in) f32. Returns (all_feats, valence, pred, pooled)."""
    B, T, D = speech.shape
    w_emo, b_emo, w_val, b_val, w_pred, b_pred = params
    vmem_limit = _vmem_limit_bytes()

    # ---- flatten frames in the wrapper (layout plumbing, zero cost) --------
    M = B * T

    # Row tile: multiple of 8 sublanes, no larger than the (8-rounded) problem,
    # and small enough that the row grid has >= 2 blocks (v7x dual-TC sharding).
    tm = max(8, (min(int(tm), ((M + 7) // 8) * 8) // 8) * 8)
    if M > 8 and pl.cdiv(M, tm) < 2:
        tm = max(8, ((pl.cdiv(M, 2) + 7) // 8) * 8)
    grid = (pl.cdiv(M, tm),)

    # bf16 compute for the streaming matmul (f32 accumulate on the MXU).
    x2d_c = speech.reshape(M, D).astype(compute_dtype)
    w_emo_c = w_emo.astype(compute_dtype)

    cost = pl.CostEstimate(
        flops=2 * M * D * HIDDEN,
        transcendentals=0,
        bytes_accessed=(M * D * x2d_c.dtype.itemsize
                        + D * HIDDEN * w_emo_c.dtype.itemsize
                        + HIDDEN * b_emo.dtype.itemsize
                        + M * HIDDEN * jnp.dtype(feats_dtype).itemsize),
    )

    feats2d = pl.pallas_call(
        _feats_kernel,
        out_shape=jax.ShapeDtypeStruct((M, HIDDEN), feats_dtype),
        grid_spec=pltpu.PrefetchScalarGridSpec(
            num_scalar_prefetch=0,
            grid=grid,
            in_specs=[
                pl.BlockSpec((tm, D), lambda i: (i, 0)),
                pl.BlockSpec((D, HIDDEN), lambda i: (0, 0)),
                pl.BlockSpec((1, HIDDEN), lambda i: (0, 0)),
            ],
            out_specs=pl.BlockSpec((tm, HIDDEN), lambda i: (i, 0)),
        ),
        compiler_params=pltpu.CompilerParams(
            dimension_semantics=("parallel",),      # shard row blocks across TCs on v7x
            vmem_limit_bytes=vmem_limit,
        ),
        cost_estimate=cost,
    )(x2d_c, w_emo_c, b_emo)

    all_feats = feats2d.reshape(B, T, HIDDEN)

    # ---- pooled computed algebraically from mean_t(x), kept in f32 ---------
    # (valid only because the synthesized emo_model is affine; D_in << 768 so
    #  this extra input read is negligible next to the feats write stream)
    xmean = speech.astype(jnp.float32).mean(axis=1)            # (B, D)

    # fuse fc_valence + fc_pred into one lane-dense (768, 128) weight
    w_heads = jnp.zeros((HIDDEN, HEADS_PAD), jnp.float32).at[:, 0:3].set(w_val)
    b_heads = jnp.zeros((1, HEADS_PAD), jnp.float32).at[:, 0:3].set(b_val)
    if USE_CE:
        w_heads = w_heads.at[:, 3:3 + NUM_CLASSES].set(w_pred)
        b_heads = b_heads.at[:, 3:3 + NUM_CLASSES].set(b_pred)

    full = lambda shape: pl.BlockSpec(shape, lambda: tuple(0 for _ in shape))
    pooled, heads = pl.pallas_call(
        _heads_kernel,
        out_shape=(
            jax.ShapeDtypeStruct((B, HIDDEN), jnp.float32),
            jax.ShapeDtypeStruct((B, HEADS_PAD), jnp.float32),
        ),
        grid_spec=pltpu.PrefetchScalarGridSpec(
            num_scalar_prefetch=0,
            grid=(),
            in_specs=[
                full((B, D)),
                full((D, HIDDEN)),
                full((1, HIDDEN)),
                full((HIDDEN, HEADS_PAD)),
                full((1, HEADS_PAD)),
            ],
            out_specs=[full((B, HIDDEN)), full((B, HEADS_PAD))],
        ),
        compiler_params=pltpu.CompilerParams(vmem_limit_bytes=vmem_limit),
    )(xmean, w_emo, b_emo, w_heads, b_heads)

    valence = heads[:, 0:3]
    pred = heads[:, 3:3 + NUM_CLASSES] if USE_CE else None
    return all_feats, valence, pred, pooled


def init_params(key, d_in):
    ks = jax.random.split(key, 6)
    w_emo = jax.random.normal(ks[0], (d_in, HIDDEN), jnp.float32) * 0.05
    b_emo = jax.random.normal(ks[1], (1, HIDDEN), jnp.float32) * 0.01
    # PyTorch nn.Linear stores (out, in); we keep the (in, out) transpose.
    w_val = jax.random.normal(ks[2], (HIDDEN, 3), jnp.float32) * 0.05
    b_val = jax.random.normal(ks[3], (1, 3), jnp.float32) * 0.01
    w_pred = jax.random.normal(ks[4], (HIDDEN, NUM_CLASSES), jnp.float32) * 0.05
    b_pred = jax.random.normal(ks[5], (1, NUM_CLASSES), jnp.float32) * 0.01
    return (w_emo, b_emo, w_val, b_val, w_pred, b_pred)


def reference(speech, params):
    w_emo, b_emo, w_val, b_val, w_pred, b_pred = params
    feats = jnp.einsum("btd,dh->bth", speech, w_emo) + b_emo[0]
    pooled = feats.mean(axis=1)
    val = pooled @ w_val + b_val[0]
    pred = pooled @ w_pred + b_pred[0]
    return feats, val, pred, pooled


if __name__ == "__main__":
    B, T, D_IN = 2, 8, 32
    key = jax.random.PRNGKey(0)
    k_x, k_p = jax.random.split(key)
    speech = jax.random.normal(k_x, (B, T, D_IN), jnp.float32)
    params = init_params(k_p, D_IN)

    # Defaults (bf16 compute + bf16 feats); tm logic yields a 2-block grid here,
    # so the tiled/pipelined + dual-TC-parallel path is exercised.
    all_feats, valence, pred, pooled = jax.block_until_ready(
        speech_classifier(speech, params)
    )

    r_feats, r_val, r_pred, r_pooled = reference(speech, params)
    # all_feats is bf16 (write-bound kernel) -> bf16-appropriate tolerance.
    assert jnp.allclose(all_feats.astype(jnp.float32), r_feats,
                        atol=5e-2, rtol=5e-2)
    # pooled / heads stay on the f32 path.
    assert jnp.allclose(pooled, r_pooled, atol=1e-4)
    assert jnp.allclose(valence, r_val, atol=1e-4)
    assert jnp.allclose(pred, r_pred, atol=1e-4)

    assert all_feats.shape == (B, T, HIDDEN)
    assert all_feats.dtype == jnp.bfloat16
    assert valence.shape == (B, 3)
    assert pred.shape == (B, NUM_CLASSES)
    assert pooled.shape == (B, HIDDEN)

    print("KERNEL_OK")
</pallas_src>

<mosaic_0001>
module attributes {stable_mosaic.version = 11 : i64} {
  func.func @_feats_kernel(%arg0: i32, %arg1: memref<8x32xbf16, #tpu.memory_space<vmem>>, %arg2: memref<32x768xbf16, #tpu.memory_space<vmem>>, %arg3: memref<1x768xf32, #tpu.memory_space<vmem>>, %arg4: memref<8x768xbf16, #tpu.memory_space<vmem>>) attributes {dimension_semantics = [#tpu.dimension_semantics<parallel>], iteration_bounds = array<i64: 2>, scalar_prefetch = 0 : i64, scratch_operands = 0 : i64, tpu.core_type = #tpu.core_type<tc>, window_params = [{transform_indices = @transform_0, window_bounds = array<i64: 8, 32>}, {pipeline_mode = #tpu.pipeline_mode<synchronous>, transform_indices = @transform_1, window_bounds = array<i64: 32, 768>}, {pipeline_mode = #tpu.pipeline_mode<synchronous>, transform_indices = @transform_2, window_bounds = array<i64: 1, 768>}, {transform_indices = @transform_3, window_bounds = array<i64: 8, 768>}]} {
    %c0 = arith.constant 0 : index
    %c0_0 = arith.constant 0 : index
    %0 = vector.load %arg1[%c0, %c0_0] : memref<8x32xbf16, #tpu.memory_space<vmem>>, vector<8x32xbf16>
    %c0_1 = arith.constant 0 : index
    %c0_2 = arith.constant 0 : index
    %1 = vector.load %arg2[%c0_1, %c0_2] : memref<32x768xbf16, #tpu.memory_space<vmem>>, vector<32x768xbf16>
    %cst = arith.constant dense<0.000000e+00> : vector<8x768xf32>
    %2 = tpu.matmul %0, %1, %cst {dimension_numbers = #tpu.dot_dimension_numbers<[1], [0], [0], [1], [0, 0, 1, 1], [], []>} : vector<8x32xbf16>, vector<32x768xbf16>, vector<8x768xf32> -> vector<8x768xf32>
    %c0_3 = arith.constant 0 : index
    %c0_4 = arith.constant 0 : index
    %3 = vector.load %arg3[%c0_3, %c0_4] : memref<1x768xf32, #tpu.memory_space<vmem>>, vector<1x768xf32>
    %4 = vector.broadcast %3 : vector<1x768xf32> to vector<8x768xf32>
    %5 = arith.addf %2, %4 : vector<8x768xf32>
    %6 = arith.truncf %5 : vector<8x768xf32> to vector<8x768xbf16>
    %c0_5 = arith.constant 0 : index
    %c0_6 = arith.constant 0 : index
    %7 = vector.load %arg4[%c0_5, %c0_6] : memref<8x768xbf16, #tpu.memory_space<vmem>>, vector<8x768xbf16>
    tpu.vector_store %arg4[%c0_5, %c0_6], %6 {strides = array<i32>} : memref<8x768xbf16, #tpu.memory_space<vmem>>, vector<8x768xbf16>,
    return
  }
  func.func @transform_0(%arg0: i32) -> (i32, i32) {
    %c0_i32 = arith.constant 0 : i32
    %c0_i32_0 = arith.constant 0 : i32
    return %arg0, %c0_i32 : i32, i32
  }
  func.func @transform_1(%arg0: i32) -> (i32, i32) {
    %c0_i32 = arith.constant 0 : i32
    %c0_i32_0 = arith.constant 0 : i32
    %c0_i32_1 = arith.constant 0 : i32
    return %c0_i32, %c0_i32_0 : i32, i32
  }
  func.func @transform_2(%arg0: i32) -> (i32, i32) {
    %c0_i32 = arith.constant 0 : i32
    %c0_i32_0 = arith.constant 0 : i32
    %c0_i32_1 = arith.constant 0 : i32
    return %c0_i32, %c0_i32_0 : i32, i32
  }
  func.func @transform_3(%arg0: i32) -> (i32, i32) {
    %c0_i32 = arith.constant 0 : i32
    %c0_i32_0 = arith.constant 0 : i32
    return %arg0, %c0_i32 : i32, i32
  }
}

</mosaic_0001>

<llo_original>
// kernel: tpu_custom_call.1
$region0: #{tpu_custom_call.1}
  #allocation0 [shape = 'u32[]', space=smem, size = 0x4, offset = 0x4, fixed_abs, tag = 'smem constant byte address 0x4 - core index']
  #allocation1 [shape = 'u32[144,128]{1,0:T(1,128)}', space=vmem, size = 0x12000, scoped, tag = 'internal scratch']
  %s0 = inlined_call_operand.hbm [shape: bf16[16,32], index: 0, kind: input, shape index: {}]
  %s1 = inlined_call_operand.hbm [shape: bf16[32,768], index: 1, kind: input, shape index: {}]
  %s2 = inlined_call_operand.hbm [shape: f32[1,768], index: 2, kind: input, shape index: {}]
  %s3 = inlined_call_operand.hbm [shape: bf16[16,768], index: 3, kind: output, shape index: {}]
  %s4 = sld [smem:[#allocation0]]
  $region57: #{tpu_custom_call.1} parent=0
    _
  %s6 = ssub.s32 1, %s4
  %s7 = scalar_select 0, %s6, %s4
  $region1: #{tpu_custom_call.1} parent=0
    #allocation2 [shape = 'u8[4096]{0}', space=vmem, size = 0x1000, scoped, tag = 'input window, operand 0']
    #allocation3 [shape = 's32[2]{0}', space=sflag, size = 0x8, scoped, tag = 'scoped memory for tpu_custom_call.1']
    #allocation4 [shape = 's32[2]{0}', space=sflag, size = 0x8, scoped, tag = 'scoped memory for tpu_custom_call.1']
    #allocation5 [shape = 'u8[49152]{0}', space=vmem, size = 0xc000, scoped, tag = 'input window, operand 1, single buffered']
    #allocation6 [shape = 's32[1]{0}', space=sflag, size = 0x4, scoped, tag = 'scoped memory for tpu_custom_call.1']
    #allocation7 [shape = 'u8[3072]{0}', space=vmem, size = 0xc00, scoped, tag = 'input window, operand 2, single buffered']
    #allocation8 [shape = 'u8[24576]{0}', space=vmem, size = 0x6000, scoped, tag = 'output window, operand 0']
    %8 = vsyncpa [#allocation3], 0
    %s9 = scalar_lea.sflag [#allocation3], 1
    %10 = vsyncpa %s9, 0
    %11 = vsyncpa [#allocation6], 0
    %12 = vsyncpa [#allocation4], 0
    %s13 = scalar_lea.sflag [#allocation4], 1
    %14 = vsyncpa %s13, 0
    loop: start=0, step=1, limit=4
    $region2: #{tpu_custom_call.1} parent=1 // loop_pre_header
      _
    $region3: #{tpu_custom_call.1} parent=1 // loop_header
      %s16 = sphi 0, %s20
      %p17 = scmp.ge.s32.totalorder %s16, 4
      %s26 = sphi 0, %s28
      %s29 = sphi 0, %s26
      %s30 = sphi 0, %s29
      %s46 = sphi 0, %s30
      %s50 = sphi 0, %s50
      %s52 = sphi 0, %s50
      %s53 = sphi 0, %s52
      %s67 = sphi 0, %s53
      %s71 = sphi 0, %s71
      %s73 = sphi 0, %s71
      %s74 = sphi 0, %s73
      %s88 = sphi 0, %s74
      %s94 = sphi 0, %s96
      %s97 = sphi 0, %s94
      %s98 = sphi 0, %s97
      %s114 = sphi 0, %s98
    $region4: #{tpu_custom_call.1} parent=1 // loop_header_branch
      %19 = sbr.rel (%p17) target = $region8
    $region5: #{tpu_custom_call.1} parent=1 // loop_body
      %s21 = ssub.s32 %s16, 1
      %s22 = ssub.s32 %s16, 2
      %s23 = sadd.s32 %s16, 1
      %s24 = ssub.s32 %s16, %s23
      %p25 = scmp.eq.s32.totalorder %s24, 0
      %s27 = sadd.s32 %s26, 1
      %s28 = scalar_select %p25, %s26, %s27
      %p31 = pneg %p25
      %p32 = scmp.eq.s32.totalorder %s16, 1
      %p33 = por %p31, %p32
      %p34 = scmp.ne.s32.totalorder %s26, %s29
      %p35 = scmp.eq.s32.totalorder %s16, 0
      %p36 = por %p34, %p35
      %p37 = scmp.ne.s32.totalorder %s26, %s29
      %p38 = scmp.eq.s32.totalorder %s21, 1
      %p39 = por %p37, %p38
      %p40 = scmp.ne.s32.totalorder %s29, %s30
      %p41 = scmp.eq.s32.totalorder %s21, 0
      %p42 = por %p40, %p41
      %p43 = scmp.ne.s32.totalorder %s29, %s30
      %p44 = scmp.eq.s32.totalorder %s22, 1
      %p45 = por %p43, %p44
      %p47 = scmp.ne.s32.totalorder %s30, %s46
      %p48 = scmp.eq.s32.totalorder %s22, 0
      %p49 = por %p47, %p48
      %s51 = sadd.s32 %s50, 1
      %p54 = scmp.eq.s32.totalorder %s16, 1
      %p55 = scmp.ne.s32.totalorder %s50, %s52
      %p56 = scmp.eq.s32.totalorder %s16, 0
      %p57 = por %p55, %p56
      %p58 = scmp.ne.s32.totalorder %s50, %s52
      %p59 = scmp.eq.s32.totalorder %s21, 1
      %p60 = por %p58, %p59
      %p61 = scmp.ne.s32.totalorder %s52, %s53
      %p62 = scmp.eq.s32.totalorder %s21, 0
      %p63 = por %p61, %p62
      %p64 = scmp.ne.s32.totalorder %s52, %s53
      %p65 = scmp.eq.s32.totalorder %s22, 1
      %p66 = por %p64, %p65
      %p68 = scmp.ne.s32.totalorder %s53, %s67
      %p69 = scmp.eq.s32.totalorder %s22, 0
      %p70 = por %p68, %p69
      %s72 = sadd.s32 %s71, 1
      %p75 = scmp.eq.s32.totalorder %s16, 1
      %p76 = scmp.ne.s32.totalorder %s71, %s73
      %p77 = scmp.eq.s32.totalorder %s16, 0
      %p78 = por %p76, %p77
      %p79 = scmp.ne.s32.totalorder %s71, %s73
      %p80 = scmp.eq.s32.totalorder %s21, 1
      %p81 = por %p79, %p80
      %p82 = scmp.ne.s32.totalorder %s73, %s74
      %p83 = scmp.eq.s32.totalorder %s21, 0
      %p84 = por %p82, %p83
      %p85 = scmp.ne.s32.totalorder %s73, %s74
      %p86 = scmp.eq.s32.totalorder %s22, 1
      %p87 = por %p85, %p86
      %p89 = scmp.ne.s32.totalorder %s74, %s88
      %p90 = scmp.eq.s32.totalorder %s22, 0
      %p91 = por %p89, %p90
      %s92 = ssub.s32 %s16, %s23
      %p93 = scmp.eq.s32.totalorder %s92, 0
      %s95 = sadd.s32 %s94, 1
      %s96 = scalar_select %p93, %s94, %s95
      %p99 = pneg %p93
      %p100 = scmp.eq.s32.totalorder %s16, 1
      %p101 = por %p99, %p100
      %p102 = scmp.ne.s32.totalorder %s94, %s97
      %p103 = scmp.eq.s32.totalorder %s16, 0
      %p104 = por %p102, %p103
      %p105 = scmp.ne.s32.totalorder %s94, %s97
      %p106 = scmp.eq.s32.totalorder %s21, 1
      %p107 = por %p105, %p106
      %p108 = scmp.ne.s32.totalorder %s97, %s98
      %p109 = scmp.eq.s32.totalorder %s21, 0
      %p110 = por %p108, %p109
      %p111 = scmp.ne.s32.totalorder %s97, %s98
      %p112 = scmp.eq.s32.totalorder %s22, 1
      %p113 = por %p111, %p112
      %p115 = scmp.ne.s32.totalorder %s98, %s114
      %p116 = scmp.eq.s32.totalorder %s22, 0
      %p117 = por %p115, %p116
      %p118 = scmp.le.s32.totalorder 1, %s16
      %p119 = scmp.lt.s32.totalorder %s16, 3
      %p120 = pnand %p118, %p119
      %p121 = pneg %p120
      // Predicated region
      $region9: #{tpu_custom_call.1} parent=5 // pred_check
        _
      $region10: #{tpu_custom_call.1} parent=5 // pred_check_branch
        %123 = sbr.rel (%p120) target = $region12
      $region11: #{tpu_custom_call.1} parent=5 // pred_region
        %s124 = ssub.s32 %s16, 1
        // Predicated region
        $region13: #{tpu_custom_call.1} parent=11 // pred_check
          %p125 = pneg %p63
        $region14: #{tpu_custom_call.1} parent=11 // pred_check_branch
          %127 = sbr.rel (%p125) target = $region16
        $region15: #{tpu_custom_call.1} parent=11 // pred_region
          %s129 = ssub.s32 1536, 1536
          %130 = vsyncadd [#allocation6], %s129
          %s131 = sshll.u32 [#allocation5], 4
          %s132 = int_to_ptr.vmem [resolvable:$true] %s131
          %137 = dma.hbm_to_vmem [thread:$0]  %s1, 1536, %s132, [#allocation6], 384, 384, 24
        $region16: #{tpu_custom_call.1} parent=11 // pred_fallthru
          _
        // Predicated region
        $region17: #{tpu_custom_call.1} parent=11 // pred_check
          %p138 = pneg %p84
        $region18: #{tpu_custom_call.1} parent=11 // pred_check_branch
          %140 = sbr.rel (%p138) target = $region20
        $region19: #{tpu_custom_call.1} parent=11 // pred_region
          %s142 = ssub.s32 96, 96
          %143 = vsyncadd [#allocation6], %s142
          %s145 = sshll.u32 [#allocation7], 4
          %s146 = int_to_ptr.vmem [resolvable:$true] %s145
          %148 = dma.hbm_to_vmem [thread:$0]  %s2, 96, %s146, [#allocation6]
        $region20: #{tpu_custom_call.1} parent=11 // pred_fallthru
          _
      $region12: #{tpu_custom_call.1} parent=5 // pred_fallthru
        _
      %p149 = scmp.lt.s32.totalorder %s16, 2
      // Predicated region
      $region21: #{tpu_custom_call.1} parent=5 // pred_check
        %p150 = pneg %p149
      $region22: #{tpu_custom_call.1} parent=5 // pred_check_branch
        %152 = sbr.rel (%p150) target = $region24
      $region23: #{tpu_custom_call.1} parent=5 // pred_region
        // Predicated region
        $region25: #{tpu_custom_call.1} parent=23 // pred_check
          %p153 = pneg %p36
        $region26: #{tpu_custom_call.1} parent=23 // pred_check_branch
          %155 = sbr.rel (%p153) target = $region28
        $region27: #{tpu_custom_call.1} parent=23 // pred_region
          %s156 = sand.u32 %s26, 1
          %s157 = scalar_lea.sflag [#allocation3], %s156
          %s158 = sand.u32 %s26, 1
          %s159 = smul.addr %s158, 4
          %s160 = scalar_lea.vmem [#allocation2], %s159
          %s162 = ssub.s32 64, 64
          %163 = vsyncadd %s157, %s162
          %s164 = smul.addr %s16, 64
          %s165 = scalar_lea.hbm %s0, %s164
          %s167 = sshll.u32 %s160, 4
          %s168 = int_to_ptr.vmem [resolvable:$true] %s167
          %170 = dma.hbm_to_vmem [thread:$0]  %s165, 64, %s168, %s157
        $region28: #{tpu_custom_call.1} parent=23 // pred_fallthru
          _
      $region24: #{tpu_custom_call.1} parent=5 // pred_fallthru
        _
      %p171 = scmp.le.s32.totalorder 1, %s16
      %p172 = scmp.lt.s32.totalorder %s16, 3
      %p173 = pnand %p171, %p172
      %p174 = pneg %p173
      // Predicated region
      $region29: #{tpu_custom_call.1} parent=5 // pred_check
        _
      $region30: #{tpu_custom_call.1} parent=5 // pred_check_branch
        %176 = sbr.rel (%p173) target = $region32
      $region31: #{tpu_custom_call.1} parent=5 // pred_region
        %s177 = ssub.s32 %s16, 1
        %s178 = sand.u32 %s29, 1
        %s179 = scalar_lea.sflag [#allocation3], %s178
        %s180 = sand.u32 %s29, 1
        %s181 = smul.addr %s180, 4
        %s182 = scalar_lea.vmem [#allocation2], %s181
        // Predicated region
        $region33: #{tpu_custom_call.1} parent=31 // pred_check
          %p183 = pneg %p42
        $region34: #{tpu_custom_call.1} parent=31 // pred_check_branch
          %185 = sbr.rel (%p183) target = $region36
        $region35: #{tpu_custom_call.1} parent=31 // pred_region
          %186 = dma.done %s179, 64
        $region36: #{tpu_custom_call.1} parent=31 // pred_fallthru
          _
        // Predicated region
        $region37: #{tpu_custom_call.1} parent=31 // pred_check
          %p187 = pneg %p63
        $region38: #{tpu_custom_call.1} parent=31 // pred_check_branch
          %189 = sbr.rel (%p187) target = $region40
        $region39: #{tpu_custom_call.1} parent=31 // pred_region
          %190 = dma.done [#allocation6], 1536
        $region40: #{tpu_custom_call.1} parent=31 // pred_fallthru
          _
        // Predicated region
        $region41: #{tpu_custom_call.1} parent=31 // pred_check
          %p191 = pneg %p84
        $region42: #{tpu_custom_call.1} parent=31 // pred_check_branch
          %193 = sbr.rel (%p191) target = $region44
        $region43: #{tpu_custom_call.1} parent=31 // pred_region
          %194 = dma.done [#allocation6], 96
        $region44: #{tpu_custom_call.1} parent=31 // pred_fallthru
          _
        %s195 = sand.u32 %s29, 1
        %s196 = scalar_lea.sflag [#allocation3], %s195
        %s197 = sand.u32 %s29, 1
        %s198 = smul.addr %s197, 4
        %s199 = scalar_lea.vmem [#allocation2], %s198
        %p200 = pneg %p42
        %p201 = pneg %p39
        %p202 = pneg %p63
        %p203 = pneg %p60
        %p204 = pneg %p84
        %p205 = pneg %p81
        %p206 = pneg %p110
        %p207 = pneg %p107
        %s208 = sand.u32 %s97, 1
        %s209 = scalar_lea.sflag [#allocation4], %s208
        %s210 = sand.u32 %s97, 1
        %s211 = smul.addr %s210, 24
        %s212 = scalar_lea.vmem [#allocation8], %s211
        %v214 = vld [vmem:[%s182] sm:$0xf]
        %v215 = vld [vmem:[#allocation5] sm:$0xff]
        %v216 = vld [vmem:[#allocation5 + $0x8] sm:$0xff]
        %v217 = vld [vmem:[#allocation5 + $0x10] sm:$0xff]
        %v218 = vld [vmem:[#allocation5 + $0x18] sm:$0xff]
        %v219 = vld [vmem:[#allocation5 + $0x20] sm:$0xff]
        %v220 = vld [vmem:[#allocation5 + $0x28] sm:$0xff]
        %v221 = vld [vmem:[#allocation5 + $0x30] sm:$0xff]
        %v222 = vld [vmem:[#allocation5 + $0x38] sm:$0xff]
        %v223 = vld [vmem:[#allocation5 + $0x40] sm:$0xff]
        %v224 = vld [vmem:[#allocation5 + $0x48] sm:$0xff]
        %v225 = vld [vmem:[#allocation5 + $0x50] sm:$0xff]
        %v226 = vld [vmem:[#allocation5 + $0x58] sm:$0xff]
        %v227 = vld [vmem:[#allocation7] sm:$0x3f]
        %v229 = vlaneseq
        %v230 = vshrl.u32 %v229, 7
        %v231 = vsub.s32 0, %v230
        %v232 = vrot.slane %v227, %v231
        %v233 = vlaneseq
        %v234 = vshrl.u32 %v233, 7
        %v235 = vsub.s32 1, %v234
        %v236 = vrot.slane %v227, %v235
        %v237 = vlaneseq
        %v238 = vshrl.u32 %v237, 7
        %v239 = vsub.s32 2, %v238
        %v240 = vrot.slane %v227, %v239
        %v241 = vlaneseq
        %v242 = vshrl.u32 %v241, 7
        %v243 = vsub.s32 3, %v242
        %v244 = vrot.slane %v227, %v243
        %v245 = vlaneseq
        %v246 = vshrl.u32 %v245, 7
        %v247 = vsub.s32 4, %v246
        %v248 = vrot.slane %v227, %v247
        %v249 = vlaneseq
        %v250 = vshrl.u32 %v249, 7
        %v251 = vsub.s32 5, %v250
        %v252 = vrot.slane %v227, %v251
        %v271 = vunpack.c.l.b16 %v215
        %v272 = vunpack.c.h.b16 %v215
        %v273 = vunpack.c.l.b16 %v216
        %v274 = vunpack.c.h.b16 %v216
        %v275 = vunpack.c.l.b16 %v217
        %v276 = vunpack.c.h.b16 %v217
        %v277 = vunpack.c.l.b16 %v218
        %v278 = vunpack.c.h.b16 %v218
        %v279 = vunpack.c.l.b16 %v219
        %v280 = vunpack.c.h.b16 %v219
        %v281 = vunpack.c.l.b16 %v220
        %v282 = vunpack.c.h.b16 %v220
        %v283 = vunpack.c.l.b16 %v221
        %v284 = vunpack.c.h.b16 %v221
        %v285 = vunpack.c.l.b16 %v222
        %v286 = vunpack.c.h.b16 %v222
        %v287 = vunpack.c.l.b16 %v223
        %v288 = vunpack.c.h.b16 %v223
        %v289 = vunpack.c.l.b16 %v224
        %v290 = vunpack.c.h.b16 %v224
        %v291 = vunpack.c.l.b16 %v225
        %v292 = vunpack.c.h.b16 %v225
        %v293 = vunpack.c.l.b16 %v226
        %v294 = vunpack.c.h.b16 %v226
        %v295 = vpack.c.b16 %v277, %v271
        %v296 = vpack.c.b16 %v278, %v272
        %v297 = vpack.c.b16 %v279, %v273
        %v298 = vpack.c.b16 %v280, %v274
        %v299 = vpack.c.b16 %v281, %v275
        %v300 = vpack.c.b16 %v282, %v276
        %v301 = vpack.c.b16 %v289, %v283
        %v302 = vpack.c.b16 %v290, %v284
        %v303 = vpack.c.b16 %v291, %v285
        %v304 = vpack.c.b16 %v292, %v286
        %v305 = vpack.c.b16 %v293, %v287
        %v306 = vpack.c.b16 %v294, %v288
        %vm319 = vcmask 261120
        %v321 = vsel %vm319, %v214, 0
        %323 = vmatprep.subr.bf16.mxu0 %v296
        %324 = vmatpush1.bf16.msra.mxu0 %v295
        %325 = vmatprep.subr.bf16.mxu0 %v302
        %326 = vmatpush1.bf16.msra.mxu0 %v301
        %327 = vmatprep.subr.bf16.mxu0 0
        %328 = vmatpush1.bf16.msra.mxu0 0
        %329 = vmatprep.subr.bf16.mxu0 0
        %330 = vmatpush1.bf16.msra.mxu0 0
        %331 = vmatprep.subr.bf16.mxu0 0
        %332 = vmatpush1.bf16.msra.mxu0 0
        %333 = vmatprep.subr.bf16.mxu0 0
        %334 = vmatpush1.bf16.msra.mxu0 0
        %335 = vmatprep.subr.bf16.mxu0 0
        %336 = vmatpush1.bf16.msra.mxu0 0
        %337 = vmatprep.subr.bf16.mxu0 0
        %338 = vmatpush1.bf16.msra.mxu0 0
        %339 = vmatprep.subr.bf16.mxu0 0
        %340 = vmatpush1.bf16.msra.mxu0 0
        %341 = vmatprep.subr.bf16.mxu0 0
        %342 = vmatpush1.bf16.msra.mxu0 0
        %343 = vmatprep.subr.bf16.mxu0 0
        %344 = vmatpush1.bf16.msra.mxu0 0
        %345 = vmatprep.subr.bf16.mxu0 0
        %346 = vmatpush1.bf16.msra.mxu0 0
        %347 = vmatprep.subr.bf16.mxu0 0
        %348 = vmatpush1.bf16.msra.mxu0 0
        %349 = vmatprep.subr.bf16.mxu0 0
        %350 = vmatpush1.bf16.msra.mxu0 0
        %351 = vmatprep.subr.bf16.mxu0 0
        %352 = vmatpush1.bf16.msra.mxu0 0
        %353 = vmatprep.subr.bf16.mxu0 0
        %354 = vmatpush1.bf16.msra.mxu0 0
        %355 = vmatprep.mubr.bf16.mxu0 0
        %356 = vmatmul.mubr.bf16.gmra.mrb[0].mxu0 %v321
        %v357 = vpop.f32.mrb[0].mxu0
        %v358 = vadd.f32 %v232, %v357
        %v359 = vpop.f32.mrb[0].mxu0
        %v360 = vadd.f32 %v236, %v359
        %v361 = vpop.f32.mrb[0].mxu0
        %v362 = vpop.f32.mrb[0].mxu0
        %363 = vdwg.mxu0
        %364 = vmatprep.subr.bf16.mxu0 %v298
        %365 = vmatpush1.bf16.msra.mxu0 %v297
        %366 = vmatprep.subr.bf16.mxu0 %v304
        %367 = vmatpush1.bf16.msra.mxu0 %v303
        %368 = vmatprep.subr.bf16.mxu0 0
        %369 = vmatpush1.bf16.msra.mxu0 0
        %370 = vmatprep.subr.bf16.mxu0 0
        %371 = vmatpush1.bf16.msra.mxu0 0
        %372 = vmatprep.subr.bf16.mxu0 0
        %373 = vmatpush1.bf16.msra.mxu0 0
        %374 = vmatprep.subr.bf16.mxu0 0
        %375 = vmatpush1.bf16.msra.mxu0 0
        %376 = vmatprep.subr.bf16.mxu0 0
        %377 = vmatpush1.bf16.msra.mxu0 0
        %378 = vmatprep.subr.bf16.mxu0 0
        %379 = vmatpush1.bf16.msra.mxu0 0
        %380 = vmatprep.subr.bf16.mxu0 0
        %381 = vmatpush1.bf16.msra.mxu0 0
        %382 = vmatprep.subr.bf16.mxu0 0
        %383 = vmatpush1.bf16.msra.mxu0 0
        %384 = vmatprep.subr.bf16.mxu0 0
        %385 = vmatpush1.bf16.msra.mxu0 0
        %386 = vmatprep.subr.bf16.mxu0 0
        %387 = vmatpush1.bf16.msra.mxu0 0
        %388 = vmatprep.subr.bf16.mxu0 0
        %389 = vmatpush1.bf16.msra.mxu0 0
        %390 = vmatprep.subr.bf16.mxu0 0
        %391 = vmatpush1.bf16.msra.mxu0 0
        %392 = vmatprep.subr.bf16.mxu0 0
        %393 = vmatpush1.bf16.msra.mxu0 0
        %394 = vmatprep.subr.bf16.mxu0 0
        %395 = vmatpush1.bf16.msra.mxu0 0
        %396 = vmatprep.mubr.bf16.mxu0 0
        %397 = vmatmul.mubr.bf16.gmra.mrb[0].mxu0 %v321
        %v398 = vpop.f32.mrb[0].mxu0
        %v399 = vadd.f32 %v240, %v398
        %v400 = vpop.f32.mrb[0].mxu0
        %v401 = vadd.f32 %v244, %v400
        %v402 = vpop.f32.mrb[0].mxu0
        %v403 = vpop.f32.mrb[0].mxu0
        %404 = vdwg.mxu0
        %405 = vmatprep.subr.bf16.mxu0 %v300
        %406 = vmatpush1.bf16.msra.mxu0 %v299
        %407 = vmatprep.subr.bf16.mxu0 %v306
        %408 = vmatpush1.bf16.msra.mxu0 %v305
        %409 = vmatprep.subr.bf16.mxu0 0
        %410 = vmatpush1.bf16.msra.mxu0 0
        %411 = vmatprep.subr.bf16.mxu0 0
        %412 = vmatpush1.bf16.msra.mxu0 0
        %413 = vmatprep.subr.bf16.mxu0 0
        %414 = vmatpush1.bf16.msra.mxu0 0
        %415 = vmatprep.subr.bf16.mxu0 0
        %416 = vmatpush1.bf16.msra.mxu0 0
        %417 = vmatprep.subr.bf16.mxu0 0
        %418 = vmatpush1.bf16.msra.mxu0 0
        %419 = vmatprep.subr.bf16.mxu0 0
        %420 = vmatpush1.bf16.msra.mxu0 0
        %421 = vmatprep.subr.bf16.mxu0 0
        %422 = vmatpush1.bf16.msra.mxu0 0
        %423 = vmatprep.subr.bf16.mxu0 0
        %424 = vmatpush1.bf16.msra.mxu0 0
        %425 = vmatprep.subr.bf16.mxu0 0
        %426 = vmatpush1.bf16.msra.mxu0 0
        %427 = vmatprep.subr.bf16.mxu0 0
        %428 = vmatpush1.bf16.msra.mxu0 0
        %429 = vmatprep.subr.bf16.mxu0 0
        %430 = vmatpush1.bf16.msra.mxu0 0
        %431 = vmatprep.subr.bf16.mxu0 0
        %432 = vmatpush1.bf16.msra.mxu0 0
        %433 = vmatprep.subr.bf16.mxu0 0
        %434 = vmatpush1.bf16.msra.mxu0 0
        %435 = vmatprep.subr.bf16.mxu0 0
        %436 = vmatpush1.bf16.msra.mxu0 0
        %437 = vmatprep.mubr.bf16.mxu0 0
        %438 = vmatmul.mubr.bf16.gmra.mrb[0].mxu0 %v321
        %v439 = vpop.f32.mrb[0].mxu0
        %v440 = vadd.f32 %v248, %v439
        %v441 = vpop.f32.mrb[0].mxu0
        %v442 = vadd.f32 %v252, %v441
        %v443 = vpop.f32.mrb[0].mxu0
        %v444 = vpop.f32.mrb[0].mxu0
        %445 = vdwg.mxu0
        %v446 = vpack.c.bf16 %v358, %v358
        %v447 = vpack.c.bf16 %v360, %v360
        %v448 = vpack.c.bf16 %v399, %v399
        %v449 = vpack.c.bf16 %v401, %v401
        %v450 = vpack.c.bf16 %v440, %v440
        %v451 = vpack.c.bf16 %v442, %v442
        %v458 = vunpack.c.l.b16 %v446
        %v459 = vunpack.c.l.b16 %v447
        %v460 = vunpack.c.l.b16 %v448
        %v461 = vunpack.c.l.b16 %v449
        %v462 = vunpack.c.l.b16 %v450
        %v463 = vunpack.c.l.b16 %v451
        %v464 = vpack.c.b16 %v459, %v458
        %v465 = vpack.c.b16 %v461, %v460
        %v466 = vpack.c.b16 %v463, %v462
        %470 = vst [vmem:[%s212] sm:$0xff] %v464
        %471 = vst [vmem:[%s212 + $0x8] sm:$0xff] %v465
        %472 = vst [vmem:[%s212 + $0x10] sm:$0xff] %v466
        %s473 = sand.u32 %s97, 1
        %s474 = scalar_lea.sflag [#allocation4], %s473
        %s475 = sand.u32 %s97, 1
        %s476 = smul.addr %s475, 24
        %s477 = scalar_lea.vmem [#allocation8], %s476
        // Predicated region
        $region45: #{tpu_custom_call.1} parent=31 // pred_check
          %p478 = pneg %p107
        $region46: #{tpu_custom_call.1} parent=31 // pred_check_branch
          %480 = sbr.rel (%p478) target = $region48
        $region47: #{tpu_custom_call.1} parent=31 // pred_region
          %s482 = ssub.s32 384, 384
          %483 = vsyncadd %s474, %s482
          %s484 = smul.addr %s21, 6
          %s485 = smul.addr %s484, 64
          %s486 = scalar_lea.hbm %s3, %s485
          %s488 = sshll.u32 %s477, 4
          %s489 = int_to_ptr.vmem [resolvable:$true] %s488
          %491 = dma.vmem_to_hbm [thread:$0]  %s489, 384, %s486, %s474
        $region48: #{tpu_custom_call.1} parent=31 // pred_fallthru
          _
      $region32: #{tpu_custom_call.1} parent=5 // pred_fallthru
        _
      %p492 = scmp.le.s32.totalorder 2, %s16
      // Predicated region
      $region49: #{tpu_custom_call.1} parent=5 // pred_check
        %p493 = pneg %p492
      $region50: #{tpu_custom_call.1} parent=5 // pred_check_branch
        %495 = sbr.rel (%p493) target = $region52
      $region51: #{tpu_custom_call.1} parent=5 // pred_region
        %s496 = ssub.s32 %s16, 2
        // Predicated region
        $region53: #{tpu_custom_call.1} parent=51 // pred_check
          %p497 = pneg %p113
        $region54: #{tpu_custom_call.1} parent=51 // pred_check_branch
          %499 = sbr.rel (%p497) target = $region56
        $region55: #{tpu_custom_call.1} parent=51 // pred_region
          %s500 = sand.u32 %s98, 1
          %s501 = scalar_lea.sflag [#allocation4], %s500
          %s502 = sand.u32 %s98, 1
          %s503 = smul.addr %s502, 24
          %s504 = scalar_lea.vmem [#allocation8], %s503
          %505 = dma.done %s501, 384
        $region56: #{tpu_custom_call.1} parent=51 // pred_fallthru
          _
      $region52: #{tpu_custom_call.1} parent=5 // pred_fallthru
        _
    $region6: #{tpu_custom_call.1} parent=1 // loop_footer
      %s20 = sadd.s32 1, %s16
    $region7: #{tpu_custom_call.1} parent=1 // loop_footer_branch
      %15 = sbr.rel target = $region3
    $region8: #{tpu_custom_call.1} parent=1 // loop_exit
      _
    %506 = vsyncpa [#allocation3], 1
    %s507 = scalar_lea.sflag [#allocation3], 1
    %508 = vsyncpa %s507, 1
    %509 = vsyncpa [#allocation6], 1
    %510 = vsyncpa [#allocation4], 1
    %s511 = scalar_lea.sflag [#allocation4], 1
    %512 = vsyncpa %s511, 1

</llo_original>
